<compile_context>
chip_gen: v7x
topology: tpu7x:2x2x1
jax: 0.10.0
libtpu: 0.0.40
codegen_flags: <defaults>
</compile_context>

<pallas_src>
import functools

import jax
import jax.numpy as jnp
from jax.experimental import pallas as pl
from jax.experimental.pallas import tpu as pltpu

# Small, RoBERTa-like config (synthetic, deterministic init).
HIDDEN = 128          # config.hidden_size
VOCAB = 64            # config.vocab_size
MAX_POS = 48          # config.max_position_embeddings
TYPE_VOCAB = 2        # config.type_vocab_size
PAD_TOKEN_ID = 1      # config.pad_token_id  (RoBERTa padding_idx)
LN_EPS = 1e-5         # config.layer_norm_eps


def _round_up(x, m):
    return (x + m - 1) // m * m


def _embed_ln_kernel(idx_ref,       # (T, 2) int32: [:,0]=token id, [:,1]=V+pos id
                     tbl_ref,       # (K, H) fused [word ; pos+tok0] table (VMEM-resident)
                     g_ref, b_ref,  # (1, H) LayerNorm weight / bias
                     o_ref):        # (T, H) output tile
    T = idx_ref.shape[0]
    K = tbl_ref.shape[0]

    idx = idx_ref[...]                              # (T, 2)
    wid = idx[:, 0:1]                               # (T, 1) word row
    pid = idx[:, 1:2]                               # (T, 1) V + position row

    # Single fused gather: one 0/1 matrix with two ones per row, one MXU
    # matmul.  Exact: the one-hot is 0/1 and HIGHEST precision keeps the f32
    # table values intact; word row (< V) and position row (>= V) never
    # collide, so the result is word[id] + pos[pos] + tok[0].
    col = jax.lax.broadcasted_iota(jnp.int32, (T, K), 1)
    oh = ((col == wid) | (col == pid)).astype(jnp.float32)
    x = jnp.dot(oh, tbl_ref[...],
                preferred_element_type=jnp.float32,
                precision=jax.lax.Precision.HIGHEST)

    # LayerNorm over the hidden (lane) axis — centered two-pass variance
    # (matches nn.LayerNorm; robust to rows with |mean| >> std).
    mean = jnp.mean(x, axis=-1, keepdims=True)
    xc = x - mean
    var = jnp.mean(xc * xc, axis=-1, keepdims=True)
    inv = jax.lax.rsqrt(var + LN_EPS)
    o_ref[...] = (xc * inv * g_ref[...] + b_ref[...]).astype(o_ref.dtype)


def roberta_embedding(input_ids, position_ids, params, *,
                      token_tile=1024, out_dtype=jnp.bfloat16):
    """input_ids, position_ids: [S] int32.  Returns [S, HIDDEN] in out_dtype.

    out_dtype defaults to bf16 (halves output HBM writeback); LayerNorm math
    is always done in f32.  Pass out_dtype=jnp.float32 for full-precision out.
    """
    S = input_ids.shape[0]
    word = params["word_embeddings"]
    posb = params["position_embeddings"]
    tok = params["token_type_embeddings"]
    gamma = params["ln_weight"]
    beta = params["ln_bias"]
    V, H = word.shape
    P = posb.shape[0]

    # Fold token_type row 0 into the position table, fuse with the word table
    # into one gather table; pad rows to a multiple of 128 so the MXU
    # contraction is lane-dense (padded rows are never selected).
    table = jnp.concatenate([word, posb + tok[0][None, :]], axis=0)
    K = _round_up(V + P, 128)
    table = jnp.pad(table, ((0, K - (V + P)), (0, 0)))

    # RoBERTa position offset (padding_idx + 1), clamped so the gather stays
    # inside the position table.  Out-of-range token ids would silently gather
    # a zero/valid row — acceptable for trusted vLLM inputs.
    ids = input_ids.astype(jnp.int32)
    pos = jnp.clip(position_ids.astype(jnp.int32) + PAD_TOKEN_ID + 1, 0, P - 1)
    idx = jnp.stack([ids, V + pos], axis=1)          # (S, 2) packed indices

    # Token tile: multiple of 8 sublanes, capped by the (padded) sequence, and
    # capped at ceil(S/2) so long sequences give >= 2 grid steps for the two
    # v7x TensorCores (neutral on v5e/v6e).
    T = min(_round_up(token_tile, 8),
            _round_up(S, 8),
            _round_up(pl.cdiv(S, 2), 8))
    S_pad = _round_up(S, T)
    idx = jnp.pad(idx, ((0, S_pad - S), (0, 0)))     # pad rows select row 0 (sliced off)

    grid_spec = pltpu.PrefetchScalarGridSpec(
        num_scalar_prefetch=0,
        grid=(S_pad // T,),
        in_specs=[
            pl.BlockSpec((T, 2), lambda i: (i, 0)),   # packed (token id, V+pos id)
            pl.BlockSpec((K, H), lambda i: (0, 0)),   # fused table (VMEM-resident)
            pl.BlockSpec((1, H), lambda i: (0, 0)),   # LN gamma
            pl.BlockSpec((1, H), lambda i: (0, 0)),   # LN beta
        ],
        out_specs=pl.BlockSpec((T, H), lambda i: (i, 0)),
    )

    out = pl.pallas_call(
        _embed_ln_kernel,
        out_shape=jax.ShapeDtypeStruct((S_pad, H), out_dtype),
        grid_spec=grid_spec,
        compiler_params=pltpu.CompilerParams(
            dimension_semantics=("parallel",)),       # tiles are independent
    )(idx, table, gamma, beta)
    return out[:S]


def _init_params(key):
    k1, k2, k3, k4, k5 = jax.random.split(key, 5)
    word = 0.02 * jax.random.normal(k1, (VOCAB, HIDDEN), jnp.float32)
    pos = 0.02 * jax.random.normal(k2, (MAX_POS, HIDDEN), jnp.float32)
    # nn.Embedding(padding_idx=...) zero-initializes the padding row.
    pos = pos.at[PAD_TOKEN_ID].set(0.0)
    tok = 0.02 * jax.random.normal(k3, (TYPE_VOCAB, HIDDEN), jnp.float32)
    gamma = 1.0 + 0.1 * jax.random.normal(k4, (1, HIDDEN), jnp.float32)
    beta = 0.1 * jax.random.normal(k5, (1, HIDDEN), jnp.float32)
    return {
        "word_embeddings": word,
        "position_embeddings": pos,
        "token_type_embeddings": tok,
        "ln_weight": gamma,
        "ln_bias": beta,
    }


def _reference(input_ids, position_ids, params):
    P = params["position_embeddings"].shape[0]
    pos = jnp.clip(position_ids + PAD_TOKEN_ID + 1, 0, P - 1)
    x = (params["word_embeddings"][input_ids]
         + params["position_embeddings"][pos]
         + params["token_type_embeddings"][0][None, :])
    mean = x.mean(-1, keepdims=True)
    xc = x - mean
    var = (xc * xc).mean(-1, keepdims=True)
    return xc / jnp.sqrt(var + LN_EPS) * params["ln_weight"] + params["ln_bias"]


if __name__ == "__main__":
    key = jax.random.PRNGKey(0)
    pkey, ikey = jax.random.split(key)
    params = _init_params(pkey)

    S = 40  # flat token list, as vLLM passes it (small; still multi-tile + padding)
    input_ids = jax.random.randint(ikey, (S,), 0, VOCAB, dtype=jnp.int32)
    position_ids = jnp.arange(S, dtype=jnp.int32)

    ref = _reference(input_ids, position_ids, params)

    # Small tile so the example exercises a multi-step grid; f32 output for
    # the exactness check.
    run = functools.partial(roberta_embedding, token_tile=16,
                            out_dtype=jnp.float32)
    out = jax.block_until_ready(run(input_ids, position_ids, params))
    assert out.shape == (S, HIDDEN) and out.dtype == jnp.float32
    assert jnp.allclose(out, ref, atol=2e-5, rtol=2e-5), "f32 mismatch vs reference"

    # Default path: large tile (auto-capped), bf16 output writeback.
    out_bf16 = jax.block_until_ready(
        roberta_embedding(input_ids, position_ids, params))
    assert out_bf16.shape == (S, HIDDEN) and out_bf16.dtype == jnp.bfloat16
    assert jnp.allclose(out_bf16.astype(jnp.float32), ref, atol=5e-2), \
        "bf16 mismatch vs reference"

    print("KERNEL_OK")
</pallas_src>

<mosaic_0001>
module attributes {stable_mosaic.version = 11 : i64} {
  func.func @_embed_ln_kernel(%arg0: i32, %arg1: memref<16x2xi32, #tpu.memory_space<vmem>>, %arg2: memref<128x128xf32, #tpu.memory_space<vmem>>, %arg3: memref<1x128xf32, #tpu.memory_space<vmem>>, %arg4: memref<1x128xf32, #tpu.memory_space<vmem>>, %arg5: memref<16x128xf32, #tpu.memory_space<vmem>>) attributes {dimension_semantics = [#tpu.dimension_semantics<parallel>], iteration_bounds = array<i64: 3>, scalar_prefetch = 0 : i64, scratch_operands = 0 : i64, tpu.core_type = #tpu.core_type<tc>, window_params = [{transform_indices = @transform_0, window_bounds = array<i64: 16, 2>}, {pipeline_mode = #tpu.pipeline_mode<synchronous>, transform_indices = @transform_1, window_bounds = array<i64: 128, 128>}, {pipeline_mode = #tpu.pipeline_mode<synchronous>, transform_indices = @transform_2, window_bounds = array<i64: 1, 128>}, {pipeline_mode = #tpu.pipeline_mode<synchronous>, transform_indices = @transform_3, window_bounds = array<i64: 1, 128>}, {transform_indices = @transform_4, window_bounds = array<i64: 16, 128>}]} {
    %c0 = arith.constant 0 : index
    %c0_0 = arith.constant 0 : index
    %0 = vector.load %arg1[%c0, %c0_0] : memref<16x2xi32, #tpu.memory_space<vmem>>, vector<16x2xi32>
    %1 = vector.extract_strided_slice %0 {offsets = [0, 0], sizes = [16, 1], strides = [1, 1]} : vector<16x2xi32> to vector<16x1xi32>
    %2 = vector.extract_strided_slice %0 {offsets = [0, 1], sizes = [16, 1], strides = [1, 1]} : vector<16x2xi32> to vector<16x1xi32>
    %3 = tpu.iota {dimensions = array<i32: 1>} : vector<16x128xi32>
    %4 = vector.broadcast %1 : vector<16x1xi32> to vector<16x128xi32>
    %5 = arith.cmpi eq, %3, %4 : vector<16x128xi32>
    %6 = vector.broadcast %2 : vector<16x1xi32> to vector<16x128xi32>
    %7 = arith.cmpi eq, %3, %6 : vector<16x128xi32>
    %8 = arith.ori %5, %7 : vector<16x128xi1>
    %9 = arith.extui %8 : vector<16x128xi1> to vector<16x128xi32>
    %10 = arith.sitofp %9 : vector<16x128xi32> to vector<16x128xf32>
    %c0_1 = arith.constant 0 : index
    %c0_2 = arith.constant 0 : index
    %11 = vector.load %arg2[%c0_1, %c0_2] : memref<128x128xf32, #tpu.memory_space<vmem>>, vector<128x128xf32>
    %cst = arith.constant dense<0.000000e+00> : vector<16x128xf32>
    %12 = tpu.matmul %10, %11, %cst {dimension_numbers = #tpu.dot_dimension_numbers<[1], [0], [0], [1], [0, 0, 1, 1], [], []>, precision = #tpu.contract_precision<fp32>} : vector<16x128xf32>, vector<128x128xf32>, vector<16x128xf32> -> vector<16x128xf32>
    %cst_3 = arith.constant dense<0.000000e+00> : vector<16xf32>
    %13 = vector.multi_reduction <add>, %12, %cst_3 [1] : vector<16x128xf32> to vector<16xf32>
    %14 = vector.shape_cast %13 : vector<16xf32> to vector<16x1xf32>
    %cst_4 = arith.constant 1.280000e+02 : f32
    %15 = vector.broadcast %cst_4 : f32 to vector<16x1xf32>
    %16 = arith.divf %14, %15 : vector<16x1xf32>
    %17 = vector.broadcast %16 : vector<16x1xf32> to vector<16x128xf32>
    %18 = arith.subf %12, %17 : vector<16x128xf32>
    %19 = arith.mulf %18, %18 : vector<16x128xf32>
    %cst_5 = arith.constant dense<0.000000e+00> : vector<16xf32>
    %20 = vector.multi_reduction <add>, %19, %cst_5 [1] : vector<16x128xf32> to vector<16xf32>
    %21 = vector.shape_cast %20 : vector<16xf32> to vector<16x1xf32>
    %cst_6 = arith.constant 1.280000e+02 : f32
    %22 = vector.broadcast %cst_6 : f32 to vector<16x1xf32>
    %23 = arith.divf %21, %22 : vector<16x1xf32>
    %cst_7 = arith.constant 9.99999974E-6 : f32
    %24 = vector.broadcast %cst_7 : f32 to vector<16x1xf32>
    %25 = arith.addf %23, %24 : vector<16x1xf32>
    %26 = math.rsqrt %25 : vector<16x1xf32>
    %27 = vector.broadcast %26 : vector<16x1xf32> to vector<16x128xf32>
    %28 = arith.mulf %18, %27 : vector<16x128xf32>
    %c0_8 = arith.constant 0 : index
    %c0_9 = arith.constant 0 : index
    %29 = vector.load %arg3[%c0_8, %c0_9] : memref<1x128xf32, #tpu.memory_space<vmem>>, vector<1x128xf32>
    %30 = vector.broadcast %29 : vector<1x128xf32> to vector<16x128xf32>
    %31 = arith.mulf %28, %30 : vector<16x128xf32>
    %c0_10 = arith.constant 0 : index
    %c0_11 = arith.constant 0 : index
    %32 = vector.load %arg4[%c0_10, %c0_11] : memref<1x128xf32, #tpu.memory_space<vmem>>, vector<1x128xf32>
    %33 = vector.broadcast %32 : vector<1x128xf32> to vector<16x128xf32>
    %34 = arith.addf %31, %33 : vector<16x128xf32>
    %c0_12 = arith.constant 0 : index
    %c0_13 = arith.constant 0 : index
    %35 = vector.load %arg5[%c0_12, %c0_13] : memref<16x128xf32, #tpu.memory_space<vmem>>, vector<16x128xf32>
    tpu.vector_store %arg5[%c0_12, %c0_13], %34 {strides = array<i32>} : memref<16x128xf32, #tpu.memory_space<vmem>>, vector<16x128xf32>,
    return
  }
  func.func @transform_0(%arg0: i32) -> (i32, i32) {
    %c0_i32 = arith.constant 0 : i32
    %c0_i32_0 = arith.constant 0 : i32
    return %arg0, %c0_i32 : i32, i32
  }
  func.func @transform_1(%arg0: i32) -> (i32, i32) {
    %c0_i32 = arith.constant 0 : i32
    %c0_i32_0 = arith.constant 0 : i32
    %c0_i32_1 = arith.constant 0 : i32
    return %c0_i32, %c0_i32_0 : i32, i32
  }
  func.func @transform_2(%arg0: i32) -> (i32, i32) {
    %c0_i32 = arith.constant 0 : i32
    %c0_i32_0 = arith.constant 0 : i32
    %c0_i32_1 = arith.constant 0 : i32
    return %c0_i32, %c0_i32_0 : i32, i32
  }
  func.func @transform_3(%arg0: i32) -> (i32, i32) {
    %c0_i32 = arith.constant 0 : i32
    %c0_i32_0 = arith.constant 0 : i32
    %c0_i32_1 = arith.constant 0 : i32
    return %c0_i32, %c0_i32_0 : i32, i32
  }
  func.func @transform_4(%arg0: i32) -> (i32, i32) {
    %c0_i32 = arith.constant 0 : i32
    %c0_i32_0 = arith.constant 0 : i32
    return %arg0, %c0_i32 : i32, i32
  }
}

</mosaic_0001>

<llo_original>
// kernel: tpu_custom_call.1
$region0: #{tpu_custom_call.1}
  #allocation0 [shape = 'u32[]', space=smem, size = 0x4, offset = 0x4, fixed_abs, tag = 'smem constant byte address 0x4 - core index']
  #allocation1 [shape = 'u32[144,128]{1,0:T(1,128)}', space=vmem, size = 0x12000, scoped, tag = 'internal scratch']
  %s0 = inlined_call_operand.vmem [shape: s32[48,2], index: 0, kind: input, shape index: {}]
  %s1 = inlined_call_operand.hbm [shape: f32[128,128], index: 1, kind: input, shape index: {}]
  %s2 = inlined_call_operand.vmem [shape: f32[1,128], index: 2, kind: input, shape index: {}]
  %s3 = inlined_call_operand.vmem [shape: f32[1,128], index: 3, kind: input, shape index: {}]
  %s4 = inlined_call_operand.hbm [shape: f32[48,128], index: 4, kind: output, shape index: {}]
  %s5 = sld [smem:[#allocation0]]
  $region53: #{tpu_custom_call.1} parent=0
    _
  %s7 = ssub.s32 1, %s5
  %s8 = scalar_select 0, %s7, %s5
  $region1: #{tpu_custom_call.1} parent=0
    #allocation2 [shape = 'u8[65536]{0}', space=vmem, size = 0x10000, scoped, tag = 'input window, operand 1, single buffered']
    #allocation3 [shape = 's32[2]{0}', space=sflag, size = 0x8, scoped, tag = 'scoped memory for tpu_custom_call.1']
    #allocation4 [shape = 's32[2]{0}', space=sflag, size = 0x8, scoped, tag = 'scoped memory for tpu_custom_call.1']
    #allocation5 [shape = 'u8[16384]{0}', space=vmem, size = 0x4000, scoped, tag = 'output window, operand 0']
    %9 = vsyncpa [#allocation3], 0
    %10 = vsyncpa [#allocation4], 0
    %s11 = scalar_lea.sflag [#allocation4], 1
    %12 = vsyncpa %s11, 0
    loop: start=0, step=1, limit=5
    $region2: #{tpu_custom_call.1} parent=1 // loop_pre_header
      _
    $region3: #{tpu_custom_call.1} parent=1 // loop_header
      %s14 = sphi 0, %s18
      %p15 = scmp.ge.s32.totalorder %s14, 5
      %s24 = sphi 0, %s26
      %s27 = sphi 0, %s24
      %s28 = sphi 0, %s27
      %s44 = sphi 0, %s28
      %s48 = sphi 0, %s48
      %s50 = sphi 0, %s48
      %s51 = sphi 0, %s50
      %s65 = sphi 0, %s51
      %s69 = sphi 0, %s69
      %s71 = sphi 0, %s69
      %s72 = sphi 0, %s71
      %s86 = sphi 0, %s72
      %s90 = sphi 0, %s90
      %s92 = sphi 0, %s90
      %s93 = sphi 0, %s92
      %s107 = sphi 0, %s93
      %s113 = sphi 0, %s115
      %s116 = sphi 0, %s113
      %s117 = sphi 0, %s116
      %s133 = sphi 0, %s117
    $region4: #{tpu_custom_call.1} parent=1 // loop_header_branch
      %17 = sbr.rel (%p15) target = $region8
    $region5: #{tpu_custom_call.1} parent=1 // loop_body
      %s19 = ssub.s32 %s14, 1
      %s20 = ssub.s32 %s14, 2
      %s21 = sadd.s32 %s14, 1
      %s22 = ssub.s32 %s14, %s21
      %p23 = scmp.eq.s32.totalorder %s22, 0
      %s25 = sadd.s32 %s24, 1
      %s26 = scalar_select %p23, %s24, %s25
      %p29 = pneg %p23
      %p30 = scmp.eq.s32.totalorder %s14, 2
      %p31 = por %p29, %p30
      %p32 = scmp.ne.s32.totalorder %s24, %s27
      %p33 = scmp.eq.s32.totalorder %s14, 0
      %p34 = por %p32, %p33
      %p35 = scmp.ne.s32.totalorder %s24, %s27
      %p36 = scmp.eq.s32.totalorder %s19, 2
      %p37 = por %p35, %p36
      %p38 = scmp.ne.s32.totalorder %s27, %s28
      %p39 = scmp.eq.s32.totalorder %s19, 0
      %p40 = por %p38, %p39
      %p41 = scmp.ne.s32.totalorder %s27, %s28
      %p42 = scmp.eq.s32.totalorder %s20, 2
      %p43 = por %p41, %p42
      %p45 = scmp.ne.s32.totalorder %s28, %s44
      %p46 = scmp.eq.s32.totalorder %s20, 0
      %p47 = por %p45, %p46
      %s49 = sadd.s32 %s48, 1
      %p52 = scmp.eq.s32.totalorder %s14, 2
      %p53 = scmp.ne.s32.totalorder %s48, %s50
      %p54 = scmp.eq.s32.totalorder %s14, 0
      %p55 = por %p53, %p54
      %p56 = scmp.ne.s32.totalorder %s48, %s50
      %p57 = scmp.eq.s32.totalorder %s19, 2
      %p58 = por %p56, %p57
      %p59 = scmp.ne.s32.totalorder %s50, %s51
      %p60 = scmp.eq.s32.totalorder %s19, 0
      %p61 = por %p59, %p60
      %p62 = scmp.ne.s32.totalorder %s50, %s51
      %p63 = scmp.eq.s32.totalorder %s20, 2
      %p64 = por %p62, %p63
      %p66 = scmp.ne.s32.totalorder %s51, %s65
      %p67 = scmp.eq.s32.totalorder %s20, 0
      %p68 = por %p66, %p67
      %s70 = sadd.s32 %s69, 1
      %p73 = scmp.eq.s32.totalorder %s14, 2
      %p74 = scmp.ne.s32.totalorder %s69, %s71
      %p75 = scmp.eq.s32.totalorder %s14, 0
      %p76 = por %p74, %p75
      %p77 = scmp.ne.s32.totalorder %s69, %s71
      %p78 = scmp.eq.s32.totalorder %s19, 2
      %p79 = por %p77, %p78
      %p80 = scmp.ne.s32.totalorder %s71, %s72
      %p81 = scmp.eq.s32.totalorder %s19, 0
      %p82 = por %p80, %p81
      %p83 = scmp.ne.s32.totalorder %s71, %s72
      %p84 = scmp.eq.s32.totalorder %s20, 2
      %p85 = por %p83, %p84
      %p87 = scmp.ne.s32.totalorder %s72, %s86
      %p88 = scmp.eq.s32.totalorder %s20, 0
      %p89 = por %p87, %p88
      %s91 = sadd.s32 %s90, 1
      %p94 = scmp.eq.s32.totalorder %s14, 2
      %p95 = scmp.ne.s32.totalorder %s90, %s92
      %p96 = scmp.eq.s32.totalorder %s14, 0
      %p97 = por %p95, %p96
      %p98 = scmp.ne.s32.totalorder %s90, %s92
      %p99 = scmp.eq.s32.totalorder %s19, 2
      %p100 = por %p98, %p99
      %p101 = scmp.ne.s32.totalorder %s92, %s93
      %p102 = scmp.eq.s32.totalorder %s19, 0
      %p103 = por %p101, %p102
      %p104 = scmp.ne.s32.totalorder %s92, %s93
      %p105 = scmp.eq.s32.totalorder %s20, 2
      %p106 = por %p104, %p105
      %p108 = scmp.ne.s32.totalorder %s93, %s107
      %p109 = scmp.eq.s32.totalorder %s20, 0
      %p110 = por %p108, %p109
      %s111 = ssub.s32 %s14, %s21
      %p112 = scmp.eq.s32.totalorder %s111, 0
      %s114 = sadd.s32 %s113, 1
      %s115 = scalar_select %p112, %s113, %s114
      %p118 = pneg %p112
      %p119 = scmp.eq.s32.totalorder %s14, 2
      %p120 = por %p118, %p119
      %p121 = scmp.ne.s32.totalorder %s113, %s116
      %p122 = scmp.eq.s32.totalorder %s14, 0
      %p123 = por %p121, %p122
      %p124 = scmp.ne.s32.totalorder %s113, %s116
      %p125 = scmp.eq.s32.totalorder %s19, 2
      %p126 = por %p124, %p125
      %p127 = scmp.ne.s32.totalorder %s116, %s117
      %p128 = scmp.eq.s32.totalorder %s19, 0
      %p129 = por %p127, %p128
      %p130 = scmp.ne.s32.totalorder %s116, %s117
      %p131 = scmp.eq.s32.totalorder %s20, 2
      %p132 = por %p130, %p131
      %p134 = scmp.ne.s32.totalorder %s117, %s133
      %p135 = scmp.eq.s32.totalorder %s20, 0
      %p136 = por %p134, %p135
      %p137 = scmp.le.s32.totalorder 1, %s14
      %p138 = scmp.lt.s32.totalorder %s14, 4
      %p139 = pnand %p137, %p138
      %p140 = pneg %p139
      // Predicated region
      $region9: #{tpu_custom_call.1} parent=5 // pred_check
        _
      $region10: #{tpu_custom_call.1} parent=5 // pred_check_branch
        %142 = sbr.rel (%p139) target = $region12
      $region11: #{tpu_custom_call.1} parent=5 // pred_region
        %s143 = ssub.s32 %s14, 1
        // Predicated region
        $region13: #{tpu_custom_call.1} parent=11 // pred_check
          %p144 = pneg %p61
        $region14: #{tpu_custom_call.1} parent=11 // pred_check_branch
          %146 = sbr.rel (%p144) target = $region16
        $region15: #{tpu_custom_call.1} parent=11 // pred_region
          %s148 = ssub.s32 2048, 2048
          %149 = vsyncadd [#allocation3], %s148
          %s150 = sshll.u32 [#allocation2], 4
          %s151 = int_to_ptr.vmem [resolvable:$true] %s150
          %156 = dma.hbm_to_vmem [thread:$0]  %s1, 2048, %s151, [#allocation3], 128, 128, 8
        $region16: #{tpu_custom_call.1} parent=11 // pred_fallthru
          _
        // Predicated region
        $region17: #{tpu_custom_call.1} parent=11 // pred_check
          %p157 = pneg %p82
        $region18: #{tpu_custom_call.1} parent=11 // pred_check_branch
          %159 = sbr.rel (%p157) target = $region20
        $region19: #{tpu_custom_call.1} parent=11 // pred_region
          _
        $region20: #{tpu_custom_call.1} parent=11 // pred_fallthru
          _
        // Predicated region
        $region21: #{tpu_custom_call.1} parent=11 // pred_check
          %p160 = pneg %p103
        $region22: #{tpu_custom_call.1} parent=11 // pred_check_branch
          %162 = sbr.rel (%p160) target = $region24
        $region23: #{tpu_custom_call.1} parent=11 // pred_region
          _
        $region24: #{tpu_custom_call.1} parent=11 // pred_fallthru
          _
      $region12: #{tpu_custom_call.1} parent=5 // pred_fallthru
        _
      %p163 = scmp.lt.s32.totalorder %s14, 3
      // Predicated region
      $region25: #{tpu_custom_call.1} parent=5 // pred_check
        %p164 = pneg %p163
      $region26: #{tpu_custom_call.1} parent=5 // pred_check_branch
        %166 = sbr.rel (%p164) target = $region28
      $region27: #{tpu_custom_call.1} parent=5 // pred_region
        // Predicated region
        $region29: #{tpu_custom_call.1} parent=27 // pred_check
          %p167 = pneg %p34
        $region30: #{tpu_custom_call.1} parent=27 // pred_check_branch
          %169 = sbr.rel (%p167) target = $region32
        $region31: #{tpu_custom_call.1} parent=27 // pred_region
          %s170 = smul.u32 2, %s14
          %p171 = scmp.lt.s32.totalorder %s170, 5
          %s172 = scalar_select %p171, %s170, 5
          %s173 = smul.addr %s172, 8
          %s174 = scalar_lea.vmem %s0, %s173
          %s175 = smul.u32 2, %s14
        $region32: #{tpu_custom_call.1} parent=27 // pred_fallthru
          _
      $region28: #{tpu_custom_call.1} parent=5 // pred_fallthru
        _
      %p176 = scmp.le.s32.totalorder 1, %s14
      %p177 = scmp.lt.s32.totalorder %s14, 4
      %p178 = pnand %p176, %p177
      %p179 = pneg %p178
      // Predicated region
      $region33: #{tpu_custom_call.1} parent=5 // pred_check
        _
      $region34: #{tpu_custom_call.1} parent=5 // pred_check_branch
        %181 = sbr.rel (%p178) target = $region36
      $region35: #{tpu_custom_call.1} parent=5 // pred_region
        %s182 = ssub.s32 %s14, 1
        // Predicated region
        $region37: #{tpu_custom_call.1} parent=35 // pred_check
          %p183 = pneg %p61
        $region38: #{tpu_custom_call.1} parent=35 // pred_check_branch
          %185 = sbr.rel (%p183) target = $region40
        $region39: #{tpu_custom_call.1} parent=35 // pred_region
          %186 = dma.done [#allocation3], 2048
        $region40: #{tpu_custom_call.1} parent=35 // pred_fallthru
          _
        %s187 = smul.u32 2, %s19
        %p188 = scmp.lt.s32.totalorder %s187, 5
        %s189 = scalar_select %p188, %s187, 5
        %s190 = smul.addr %s189, 8
        %s191 = scalar_lea.vmem %s0, %s190
        %p192 = pneg %p40
        %p193 = pneg %p37
        %p194 = pneg %p61
        %p195 = pneg %p58
        %p196 = pneg %p82
        %p197 = pneg %p79
        %p198 = pneg %p103
        %p199 = pneg %p100
        %p200 = pneg %p129
        %p201 = pneg %p126
        %s202 = sand.u32 %s116, 1
        %s203 = scalar_lea.sflag [#allocation4], %s202
        %s204 = sand.u32 %s116, 1
        %s205 = smul.addr %s204, 16
        %s206 = scalar_lea.vmem [#allocation5], %s205
        %s207 = smul.u32 2, %s19
        %p208 = scmp.lt.s32.totalorder %s207, 5
        %s209 = scalar_select %p208, %s207, 5
        %s210 = smul.addr %s209, 8
        %s211 = scalar_lea.vmem %s0, %s210
        %s212 = smul.u32 2, %s19
        %s213 = smul.u32 2, %s19
        %v214 = vld [vmem:[%s211] sm:$0xff]
        %v215 = vld [vmem:[%s211 + $0x8] sm:$0xff]
        %v216 = vlaneseq
        %v217 = vand.u32 %v216, 127
        %218 = vset.pattern.permute.xlu0 0
        %219 = vperm.xlu0 %218, %v214
        %v220 = vpop.permute.xlu0 %219
        %221 = vset.pattern.permute.xlu0 0
        %222 = vperm.xlu0 %221, %v215
        %v223 = vpop.permute.xlu0 %222
        %vm224 = vcmp.eq.s32.totalorder %v217, %v220
        %vm225 = vcmp.eq.s32.totalorder %v217, %v223
        %226 = vset.pattern.permute.xlu0 1
        %227 = vperm.xlu0 %226, %v214
        %v228 = vpop.permute.xlu0 %227
        %229 = vset.pattern.permute.xlu0 1
        %230 = vperm.xlu0 %229, %v215
        %v231 = vpop.permute.xlu0 %230
        %vm232 = vcmp.eq.s32.totalorder %v217, %v228
        %vm233 = vcmp.eq.s32.totalorder %v217, %v231
        %vm234 = vmor %vm224, %vm232
        %vm235 = vmor %vm225, %vm233
        %v236 = vsel %vm234, 1, 0
        %v237 = vsel %vm235, 1, 0
        %v238 = vcvt.s32.f32 %v236
        %v239 = vcvt.s32.f32 %v237
        %v240 = vld [vmem:[#allocation2] sm:$0xff]
        %v241 = vld [vmem:[#allocation2 + $0x8] sm:$0xff]
        %v242 = vld [vmem:[#allocation2 + $0x10] sm:$0xff]
        %v243 = vld [vmem:[#allocation2 + $0x18] sm:$0xff]
        %v244 = vld [vmem:[#allocation2 + $0x20] sm:$0xff]
        %v245 = vld [vmem:[#allocation2 + $0x28] sm:$0xff]
        %v246 = vld [vmem:[#allocation2 + $0x30] sm:$0xff]
        %v247 = vld [vmem:[#allocation2 + $0x38] sm:$0xff]
        %v248 = vld [vmem:[#allocation2 + $0x40] sm:$0xff]
        %v249 = vld [vmem:[#allocation2 + $0x48] sm:$0xff]
        %v250 = vld [vmem:[#allocation2 + $0x50] sm:$0xff]
        %v251 = vld [vmem:[#allocation2 + $0x58] sm:$0xff]
        %v252 = vld [vmem:[#allocation2 + $0x60] sm:$0xff]
        %v253 = vld [vmem:[#allocation2 + $0x68] sm:$0xff]
        %v254 = vld [vmem:[#allocation2 + $0x70] sm:$0xff]
        %v255 = vld [vmem:[#allocation2 + $0x78] sm:$0xff]
        %256 = vmatprep.subr.mxu0 0.0
        %v257 = vand.u32 %v240, 4294901760
        %258 = vmatpush1.msra.mxu0 %v257
        %259 = vmatprep.subr.mxu0 0.0
        %v260 = vand.u32 %v241, 4294901760
        %261 = vmatpush1.msra.mxu0 %v260
        %262 = vmatprep.subr.mxu0 0.0
        %v263 = vand.u32 %v242, 4294901760
        %264 = vmatpush1.msra.mxu0 %v263
        %265 = vmatprep.subr.mxu0 0.0
        %v266 = vand.u32 %v243, 4294901760
        %267 = vmatpush1.msra.mxu0 %v266
        %268 = vmatprep.subr.mxu0 0.0
        %v269 = vand.u32 %v244, 4294901760
        %270 = vmatpush1.msra.mxu0 %v269
        %271 = vmatprep.subr.mxu0 0.0
        %v272 = vand.u32 %v245, 4294901760
        %273 = vmatpush1.msra.mxu0 %v272
        %274 = vmatprep.subr.mxu0 0.0
        %v275 = vand.u32 %v246, 4294901760
        %276 = vmatpush1.msra.mxu0 %v275
        %277 = vmatprep.subr.mxu0 0.0
        %v278 = vand.u32 %v247, 4294901760
        %279 = vmatpush1.msra.mxu0 %v278
        %280 = vmatprep.subr.mxu0 0.0
        %v281 = vand.u32 %v248, 4294901760
        %282 = vmatpush1.msra.mxu0 %v281
        %283 = vmatprep.subr.mxu0 0.0
        %v284 = vand.u32 %v249, 4294901760
        %285 = vmatpush1.msra.mxu0 %v284
        %286 = vmatprep.subr.mxu0 0.0
        %v287 = vand.u32 %v250, 4294901760
        %288 = vmatpush1.msra.mxu0 %v287
        %289 = vmatprep.subr.mxu0 0.0
        %v290 = vand.u32 %v251, 4294901760
        %291 = vmatpush1.msra.mxu0 %v290
        %292 = vmatprep.subr.mxu0 0.0
        %v293 = vand.u32 %v252, 4294901760
        %294 = vmatpush1.msra.mxu0 %v293
        %295 = vmatprep.subr.mxu0 0.0
        %v296 = vand.u32 %v253, 4294901760
        %297 = vmatpush1.msra.mxu0 %v296
        %298 = vmatprep.subr.mxu0 0.0
        %v299 = vand.u32 %v254, 4294901760
        %300 = vmatpush1.msra.mxu0 %v299
        %301 = vmatprep.subr.mxu0 0.0
        %v302 = vand.u32 %v255, 4294901760
        %303 = vmatpush1.msra.mxu0 %v302
        %304 = vmatprep.subr.mxu0 0.0
        %305 = vmatpush1.msra.mxu0 0.0
        %306 = vmatprep.subr.mxu0 0.0
        %307 = vmatpush1.msra.mxu0 0.0
        %308 = vmatprep.subr.mxu0 0.0
        %309 = vmatpush1.msra.mxu0 0.0
        %310 = vmatprep.subr.mxu0 0.0
        %311 = vmatpush1.msra.mxu0 0.0
        %312 = vmatprep.subr.mxu0 0.0
        %313 = vmatpush1.msra.mxu0 0.0
        %314 = vmatprep.subr.mxu0 0.0
        %315 = vmatpush1.msra.mxu0 0.0
        %316 = vmatprep.subr.mxu0 0.0
        %317 = vmatpush1.msra.mxu0 0.0
        %318 = vmatprep.subr.mxu0 0.0
        %319 = vmatpush1.msra.mxu0 0.0
        %320 = vmatprep.subr.mxu0 0.0
        %321 = vmatpush1.msra.mxu0 0.0
        %322 = vmatprep.subr.mxu0 0.0
        %323 = vmatpush1.msra.mxu0 0.0
        %324 = vmatprep.subr.mxu0 0.0
        %325 = vmatpush1.msra.mxu0 0.0
        %326 = vmatprep.subr.mxu0 0.0
        %327 = vmatpush1.msra.mxu0 0.0
        %328 = vmatprep.subr.mxu0 0.0
        %329 = vmatpush1.msra.mxu0 0.0
        %330 = vmatprep.subr.mxu0 0.0
        %331 = vmatpush1.msra.mxu0 0.0
        %332 = vmatprep.subr.mxu0 0.0
        %333 = vmatpush1.msra.mxu0 0.0
        %334 = vmatprep.subr.mxu0 0.0
        %335 = vmatpush1.msra.mxu0 0.0
        %336 = vmatprep.mubr.f32.mxu0 0.0
        %v337 = vand.u32 %v238, 4294901760
        %v338 = vsub.f32 %v238, %v337
        %v339 = vand.u32 %v338, 4294901760
        %v340 = vsub.f32 %v338, %v339
        %v341 = vand.u32 %v340, 4294901760
        %342 = vmatmul.mubr.f32.gmra.mrb[0].mxu0 %v341
        %v343 = vpop.f32.mrb[0].mxu0
        %v344 = vadd.f32 0.0, %v343
        %v345 = vpop.f32.mrb[0].mxu0
        %346 = vmatprep.mubr.f32.mxu0 0.0
        %v347 = vand.u32 %v239, 4294901760
        %v348 = vsub.f32 %v239, %v347
        %v349 = vand.u32 %v348, 4294901760
        %v350 = vsub.f32 %v348, %v349
        %v351 = vand.u32 %v350, 4294901760
        %352 = vmatmul.mubr.f32.gmra.mrb[0].mxu0 %v351
        %v353 = vpop.f32.mrb[0].mxu0
        %v354 = vadd.f32 0.0, %v353
        %v355 = vpop.f32.mrb[0].mxu0
        %356 = vdwg.mxu0
        %357 = vmatprep.subr.mxu0 0.0
        %v358 = vand.u32 %v240, 4294901760
        %v359 = vsub.f32 %v240, %v358
        %v360 = vand.u32 %v359, 4294901760
        %v361 = vsub.f32 %v359, %v360
        %v362 = vand.u32 %v361, 4294901760
        %363 = vmatpush1.msra.mxu0 %v362
        %364 = vmatprep.subr.mxu0 0.0
        %v365 = vand.u32 %v241, 4294901760
        %v366 = vsub.f32 %v241, %v365
        %v367 = vand.u32 %v366, 4294901760
        %v368 = vsub.f32 %v366, %v367
        %v369 = vand.u32 %v368, 4294901760
        %370 = vmatpush1.msra.mxu0 %v369
        %371 = vmatprep.subr.mxu0 0.0
        %v372 = vand.u32 %v242, 4294901760
        %v373 = vsub.f32 %v242, %v372
        %v374 = vand.u32 %v373, 4294901760
        %v375 = vsub.f32 %v373, %v374
        %v376 = vand.u32 %v375, 4294901760
        %377 = vmatpush1.msra.mxu0 %v376
        %378 = vmatprep.subr.mxu0 0.0
        %v379 = vand.u32 %v243, 4294901760
        %v380 = vsub.f32 %v243, %v379
        %v381 = vand.u32 %v380, 4294901760
        %v382 = vsub.f32 %v380, %v381
        %v383 = vand.u32 %v382, 4294901760
        %384 = vmatpush1.msra.mxu0 %v383
        %385 = vmatprep.subr.mxu0 0.0
        %v386 = vand.u32 %v244, 4294901760
        %v387 = vsub.f32 %v244, %v386
        %v388 = vand.u32 %v387, 4294901760
        %v389 = vsub.f32 %v387, %v388
        %v390 = vand.u32 %v389, 4294901760
        %391 = vmatpush1.msra.mxu0 %v390
        %392 = vmatprep.subr.mxu0 0.0
        %v393 = vand.u32 %v245, 4294901760
        %v394 = vsub.f32 %v245, %v393
        %v395 = vand.u32 %v394, 4294901760
        %v396 = vsub.f32 %v394, %v395
        %v397 = vand.u32 %v396, 4294901760
        %398 = vmatpush1.msra.mxu0 %v397
        %399 = vmatprep.subr.mxu0 0.0
        %v400 = vand.u32 %v246, 4294901760
        %v401 = vsub.f32 %v246, %v400
        %v402 = vand.u32 %v401, 4294901760
        %v403 = vsub.f32 %v401, %v402
        %v404 = vand.u32 %v403, 4294901760
        %405 = vmatpush1.msra.mxu0 %v404
        %406 = vmatprep.subr.mxu0 0.0
        %v407 = vand.u32 %v247, 4294901760
        %v408 = vsub.f32 %v247, %v407
        %v409 = vand.u32 %v408, 4294901760
        %v410 = vsub.f32 %v408, %v409
        %v411 = vand.u32 %v410, 4294901760
        %412 = vmatpush1.msra.mxu0 %v411
        %413 = vmatprep.subr.mxu0 0.0
        %v414 = vand.u32 %v248, 4294901760
        %v415 = vsub.f32 %v248, %v414
        %v416 = vand.u32 %v415, 4294901760
        %v417 = vsub.f32 %v415, %v416
        %v418 = vand.u32 %v417, 4294901760
        %419 = vmatpush1.msra.mxu0 %v418
        %420 = vmatprep.subr.mxu0 0.0
        %v421 = vand.u32 %v249, 4294901760
        %v422 = vsub.f32 %v249, %v421
        %v423 = vand.u32 %v422, 4294901760
        %v424 = vsub.f32 %v422, %v423
        %v425 = vand.u32 %v424, 4294901760
        %426 = vmatpush1.msra.mxu0 %v425
        %427 = vmatprep.subr.mxu0 0.0
        %v428 = vand.u32 %v250, 4294901760
        %v429 = vsub.f32 %v250, %v428
        %v430 = vand.u32 %v429, 4294901760
        %v431 = vsub.f32 %v429, %v430
        %v432 = vand.u32 %v431, 4294901760
        %433 = vmatpush1.msra.mxu0 %v432
        %434 = vmatprep.subr.mxu0 0.0
        %v435 = vand.u32 %v251, 4294901760
        %v436 = vsub.f32 %v251, %v435
        %v437 = vand.u32 %v436, 4294901760
        %v438 = vsub.f32 %v436, %v437
        %v439 = vand.u32 %v438, 4294901760
        %440 = vmatpush1.msra.mxu0 %v439
        %441 = vmatprep.subr.mxu0 0.0
        %v442 = vand.u32 %v252, 4294901760
        %v443 = vsub.f32 %v252, %v442
        %v444 = vand.u32 %v443, 4294901760
        %v445 = vsub.f32 %v443, %v444
        %v446 = vand.u32 %v445, 4294901760
        %447 = vmatpush1.msra.mxu0 %v446
        %448 = vmatprep.subr.mxu0 0.0
        %v449 = vand.u32 %v253, 4294901760
        %v450 = vsub.f32 %v253, %v449
        %v451 = vand.u32 %v450, 4294901760
        %v452 = vsub.f32 %v450, %v451
        %v453 = vand.u32 %v452, 4294901760
        %454 = vmatpush1.msra.mxu0 %v453
        %455 = vmatprep.subr.mxu0 0.0
        %v456 = vand.u32 %v254, 4294901760
        %v457 = vsub.f32 %v254, %v456
        %v458 = vand.u32 %v457, 4294901760
        %v459 = vsub.f32 %v457, %v458
        %v460 = vand.u32 %v459, 4294901760
        %461 = vmatpush1.msra.mxu0 %v460
        %462 = vmatprep.subr.mxu0 0.0
        %v463 = vand.u32 %v255, 4294901760
        %v464 = vsub.f32 %v255, %v463
        %v465 = vand.u32 %v464, 4294901760
        %v466 = vsub.f32 %v464, %v465
        %v467 = vand.u32 %v466, 4294901760
        %468 = vmatpush1.msra.mxu0 %v467
        %469 = vmatprep.subr.mxu0 0.0
        %470 = vmatpush1.msra.mxu0 0.0
        %471 = vmatprep.subr.mxu0 0.0
        %472 = vmatpush1.msra.mxu0 0.0
        %473 = vmatprep.subr.mxu0 0.0
        %474 = vmatpush1.msra.mxu0 0.0
        %475 = vmatprep.subr.mxu0 0.0
        %476 = vmatpush1.msra.mxu0 0.0
        %477 = vmatprep.subr.mxu0 0.0
        %478 = vmatpush1.msra.mxu0 0.0
        %479 = vmatprep.subr.mxu0 0.0
        %480 = vmatpush1.msra.mxu0 0.0
        %481 = vmatprep.subr.mxu0 0.0
        %482 = vmatpush1.msra.mxu0 0.0
        %483 = vmatprep.subr.mxu0 0.0
        %484 = vmatpush1.msra.mxu0 0.0
        %485 = vmatprep.subr.mxu0 0.0
        %486 = vmatpush1.msra.mxu0 0.0
        %487 = vmatprep.subr.mxu0 0.0
        %488 = vmatpush1.msra.mxu0 0.0
        %489 = vmatprep.subr.mxu0 0.0
        %490 = vmatpush1.msra.mxu0 0.0
        %491 = vmatprep.subr.mxu0 0.0
        %492 = vmatpush1.msra.mxu0 0.0
        %493 = vmatprep.subr.mxu0 0.0
        %494 = vmatpush1.msra.mxu0 0.0
        %495 = vmatprep.subr.mxu0 0.0
        %496 = vmatpush1.msra.mxu0 0.0
        %497 = vmatprep.subr.mxu0 0.0
        %498 = vmatpush1.msra.mxu0 0.0
        %499 = vmatprep.subr.mxu0 0.0
        %500 = vmatpush1.msra.mxu0 0.0
        %501 = vmatprep.mubr.f32.mxu0 0.0
        %v502 = vand.u32 %v238, 4294901760
        %503 = vmatmul.mubr.f32.gmra.mrb[0].mxu0 %v502
        %v504 = vpop.f32.mrb[0].mxu0
        %v505 = vadd.f32 %v344, %v504
        %v506 = vpop.f32.mrb[0].mxu0
        %507 = vmatprep.mubr.f32.mxu0 0.0
        %v508 = vand.u32 %v239, 4294901760
        %509 = vmatmul.mubr.f32.gmra.mrb[0].mxu0 %v508
        %v510 = vpop.f32.mrb[0].mxu0
        %v511 = vadd.f32 %v354, %v510
        %v512 = vpop.f32.mrb[0].mxu0
        %513 = vdwg.mxu0
        %514 = vmatprep.subr.mxu0 0.0
        %v515 = vand.u32 %v240, 4294901760
        %v516 = vsub.f32 %v240, %v515
        %517 = vmatpush1.msra.mxu0 %v516
        %518 = vmatprep.subr.mxu0 0.0
        %v519 = vand.u32 %v241, 4294901760
        %v520 = vsub.f32 %v241, %v519
        %521 = vmatpush1.msra.mxu0 %v520
        %522 = vmatprep.subr.mxu0 0.0
        %v523 = vand.u32 %v242, 4294901760
        %v524 = vsub.f32 %v242, %v523
        %525 = vmatpush1.msra.mxu0 %v524
        %526 = vmatprep.subr.mxu0 0.0
        %v527 = vand.u32 %v243, 4294901760
        %v528 = vsub.f32 %v243, %v527
        %529 = vmatpush1.msra.mxu0 %v528
        %530 = vmatprep.subr.mxu0 0.0
        %v531 = vand.u32 %v244, 4294901760
        %v532 = vsub.f32 %v244, %v531
        %533 = vmatpush1.msra.mxu0 %v532
        %534 = vmatprep.subr.mxu0 0.0
        %v535 = vand.u32 %v245, 4294901760
        %v536 = vsub.f32 %v245, %v535
        %537 = vmatpush1.msra.mxu0 %v536
        %538 = vmatprep.subr.mxu0 0.0
        %v539 = vand.u32 %v246, 4294901760
        %v540 = vsub.f32 %v246, %v539
        %541 = vmatpush1.msra.mxu0 %v540
        %542 = vmatprep.subr.mxu0 0.0
        %v543 = vand.u32 %v247, 4294901760
        %v544 = vsub.f32 %v247, %v543
        %545 = vmatpush1.msra.mxu0 %v544
        %546 = vmatprep.subr.mxu0 0.0
        %v547 = vand.u32 %v248, 4294901760
        %v548 = vsub.f32 %v248, %v547
        %549 = vmatpush1.msra.mxu0 %v548
        %550 = vmatprep.subr.mxu0 0.0
        %v551 = vand.u32 %v249, 4294901760
        %v552 = vsub.f32 %v249, %v551
        %553 = vmatpush1.msra.mxu0 %v552
        %554 = vmatprep.subr.mxu0 0.0
        %v555 = vand.u32 %v250, 4294901760
        %v556 = vsub.f32 %v250, %v555
        %557 = vmatpush1.msra.mxu0 %v556
        %558 = vmatprep.subr.mxu0 0.0
        %v559 = vand.u32 %v251, 4294901760
        %v560 = vsub.f32 %v251, %v559
        %561 = vmatpush1.msra.mxu0 %v560
        %562 = vmatprep.subr.mxu0 0.0
        %v563 = vand.u32 %v252, 4294901760
        %v564 = vsub.f32 %v252, %v563
        %565 = vmatpush1.msra.mxu0 %v564
        %566 = vmatprep.subr.mxu0 0.0
        %v567 = vand.u32 %v253, 4294901760
        %v568 = vsub.f32 %v253, %v567
        %569 = vmatpush1.msra.mxu0 %v568
        %570 = vmatprep.subr.mxu0 0.0
        %v571 = vand.u32 %v254, 4294901760
        %v572 = vsub.f32 %v254, %v571
        %573 = vmatpush1.msra.mxu0 %v572
        %574 = vmatprep.subr.mxu0 0.0
        %v575 = vand.u32 %v255, 4294901760
        %v576 = vsub.f32 %v255, %v575
        %577 = vmatpush1.msra.mxu0 %v576
        %578 = vmatprep.subr.mxu0 0.0
        %579 = vmatpush1.msra.mxu0 0.0
        %580 = vmatprep.subr.mxu0 0.0
        %581 = vmatpush1.msra.mxu0 0.0
        %582 = vmatprep.subr.mxu0 0.0
        %583 = vmatpush1.msra.mxu0 0.0
        %584 = vmatprep.subr.mxu0 0.0
        %585 = vmatpush1.msra.mxu0 0.0
        %586 = vmatprep.subr.mxu0 0.0
        %587 = vmatpush1.msra.mxu0 0.0
        %588 = vmatprep.subr.mxu0 0.0
        %589 = vmatpush1.msra.mxu0 0.0
        %590 = vmatprep.subr.mxu0 0.0
        %591 = vmatpush1.msra.mxu0 0.0
        %592 = vmatprep.subr.mxu0 0.0
        %593 = vmatpush1.msra.mxu0 0.0
        %594 = vmatprep.subr.mxu0 0.0
        %595 = vmatpush1.msra.mxu0 0.0
        %596 = vmatprep.subr.mxu0 0.0
        %597 = vmatpush1.msra.mxu0 0.0
        %598 = vmatprep.subr.mxu0 0.0
        %599 = vmatpush1.msra.mxu0 0.0
        %600 = vmatprep.subr.mxu0 0.0
        %601 = vmatpush1.msra.mxu0 0.0
        %602 = vmatprep.subr.mxu0 0.0
        %603 = vmatpush1.msra.mxu0 0.0
        %604 = vmatprep.subr.mxu0 0.0
        %605 = vmatpush1.msra.mxu0 0.0
        %606 = vmatprep.subr.mxu0 0.0
        %607 = vmatpush1.msra.mxu0 0.0
        %608 = vmatprep.subr.mxu0 0.0
        %609 = vmatpush1.msra.mxu0 0.0
        %610 = vmatprep.mubr.f32.mxu0 0.0
        %v611 = vand.u32 %v238, 4294901760
        %v612 = vsub.f32 %v238, %v611
        %613 = vmatmul.mubr.f32.gmra.mrb[0].mxu0 %v612
        %v614 = vpop.f32.mrb[0].mxu0
        %v615 = vadd.f32 %v505, %v614
        %v616 = vpop.f32.mrb[0].mxu0
        %617 = vmatprep.mubr.f32.mxu0 0.0
        %v618 = vand.u32 %v239, 4294901760
        %v619 = vsub.f32 %v239, %v618
        %620 = vmatmul.mubr.f32.gmra.mrb[0].mxu0 %v619
        %v621 = vpop.f32.mrb[0].mxu0
        %v622 = vadd.f32 %v511, %v621
        %v623 = vpop.f32.mrb[0].mxu0
        %624 = vdwg.mxu0
        %625 = vmatprep.subr.mxu0 0.0
        %v626 = vand.u32 %v240, 4294901760
        %627 = vmatpush1.msra.mxu0 %v626
        %628 = vmatprep.subr.mxu0 0.0
        %v629 = vand.u32 %v241, 4294901760
        %630 = vmatpush1.msra.mxu0 %v629
        %631 = vmatprep.subr.mxu0 0.0
        %v632 = vand.u32 %v242, 4294901760
        %633 = vmatpush1.msra.mxu0 %v632
        %634 = vmatprep.subr.mxu0 0.0
        %v635 = vand.u32 %v243, 4294901760
        %636 = vmatpush1.msra.mxu0 %v635
        %637 = vmatprep.subr.mxu0 0.0
        %v638 = vand.u32 %v244, 4294901760
        %639 = vmatpush1.msra.mxu0 %v638
        %640 = vmatprep.subr.mxu0 0.0
        %v641 = vand.u32 %v245, 4294901760
        %642 = vmatpush1.msra.mxu0 %v641
        %643 = vmatprep.subr.mxu0 0.0
        %v644 = vand.u32 %v246, 4294901760
        %645 = vmatpush1.msra.mxu0 %v644
        %646 = vmatprep.subr.mxu0 0.0
        %v647 = vand.u32 %v247, 4294901760
        %648 = vmatpush1.msra.mxu0 %v647
        %649 = vmatprep.subr.mxu0 0.0
        %v650 = vand.u32 %v248, 4294901760
        %651 = vmatpush1.msra.mxu0 %v650
        %652 = vmatprep.subr.mxu0 0.0
        %v653 = vand.u32 %v249, 4294901760
        %654 = vmatpush1.msra.mxu0 %v653
        %655 = vmatprep.subr.mxu0 0.0
        %v656 = vand.u32 %v250, 4294901760
        %657 = vmatpush1.msra.mxu0 %v656
        %658 = vmatprep.subr.mxu0 0.0
        %v659 = vand.u32 %v251, 4294901760
        %660 = vmatpush1.msra.mxu0 %v659
        %661 = vmatprep.subr.mxu0 0.0
        %v662 = vand.u32 %v252, 4294901760
        %663 = vmatpush1.msra.mxu0 %v662
        %664 = vmatprep.subr.mxu0 0.0
        %v665 = vand.u32 %v253, 4294901760
        %666 = vmatpush1.msra.mxu0 %v665
        %667 = vmatprep.subr.mxu0 0.0
        %v668 = vand.u32 %v254, 4294901760
        %669 = vmatpush1.msra.mxu0 %v668
        %670 = vmatprep.subr.mxu0 0.0
        %v671 = vand.u32 %v255, 4294901760
        %672 = vmatpush1.msra.mxu0 %v671
        %673 = vmatprep.subr.mxu0 0.0
        %674 = vmatpush1.msra.mxu0 0.0
        %675 = vmatprep.subr.mxu0 0.0
        %676 = vmatpush1.msra.mxu0 0.0
        %677 = vmatprep.subr.mxu0 0.0
        %678 = vmatpush1.msra.mxu0 0.0
        %679 = vmatprep.subr.mxu0 0.0
        %680 = vmatpush1.msra.mxu0 0.0
        %681 = vmatprep.subr.mxu0 0.0
        %682 = vmatpush1.msra.mxu0 0.0
        %683 = vmatprep.subr.mxu0 0.0
        %684 = vmatpush1.msra.mxu0 0.0
        %685 = vmatprep.subr.mxu0 0.0
        %686 = vmatpush1.msra.mxu0 0.0
        %687 = vmatprep.subr.mxu0 0.0
        %688 = vmatpush1.msra.mxu0 0.0
        %689 = vmatprep.subr.mxu0 0.0
        %690 = vmatpush1.msra.mxu0 0.0
        %691 = vmatprep.subr.mxu0 0.0
        %692 = vmatpush1.msra.mxu0 0.0
        %693 = vmatprep.subr.mxu0 0.0
        %694 = vmatpush1.msra.mxu0 0.0
        %695 = vmatprep.subr.mxu0 0.0
        %696 = vmatpush1.msra.mxu0 0.0
        %697 = vmatprep.subr.mxu0 0.0
        %698 = vmatpush1.msra.mxu0 0.0
        %699 = vmatprep.subr.mxu0 0.0
        %700 = vmatpush1.msra.mxu0 0.0
        %701 = vmatprep.subr.mxu0 0.0
        %702 = vmatpush1.msra.mxu0 0.0
        %703 = vmatprep.subr.mxu0 0.0
        %704 = vmatpush1.msra.mxu0 0.0
        %705 = vmatprep.mubr.f32.mxu0 0.0
        %v706 = vand.u32 %v238, 4294901760
        %v707 = vsub.f32 %v238, %v706
        %v708 = vand.u32 %v707, 4294901760
        %709 = vmatmul.mubr.f32.gmra.mrb[0].mxu0 %v708
        %v710 = vpop.f32.mrb[0].mxu0
        %v711 = vadd.f32 %v615, %v710
        %v712 = vpop.f32.mrb[0].mxu0
        %713 = vmatprep.mubr.f32.mxu0 0.0
        %v714 = vand.u32 %v239, 4294901760
        %v715 = vsub.f32 %v239, %v714
        %v716 = vand.u32 %v715, 4294901760
        %717 = vmatmul.mubr.f32.gmra.mrb[0].mxu0 %v716
        %v718 = vpop.f32.mrb[0].mxu0
        %v719 = vadd.f32 %v622, %v718
        %v720 = vpop.f32.mrb[0].mxu0
        %721 = vdwg.mxu0
        %722 = vmatprep.subr.mxu0 0.0
        %v723 = vand.u32 %v240, 4294901760
        %v724 = vsub.f32 %v240, %v723
        %v725 = vand.u32 %v724, 4294901760
        %726 = vmatpush1.msra.mxu0 %v725
        %727 = vmatprep.subr.mxu0 0.0
        %v728 = vand.u32 %v241, 4294901760
        %v729 = vsub.f32 %v241, %v728
        %v730 = vand.u32 %v729, 4294901760
        %731 = vmatpush1.msra.mxu0 %v730
        %732 = vmatprep.subr.mxu0 0.0
        %v733 = vand.u32 %v242, 4294901760
        %v734 = vsub.f32 %v242, %v733
        %v735 = vand.u32 %v734, 4294901760
        %736 = vmatpush1.msra.mxu0 %v735
        %737 = vmatprep.subr.mxu0 0.0
        %v738 = vand.u32 %v243, 4294901760
        %v739 = vsub.f32 %v243, %v738
        %v740 = vand.u32 %v739, 4294901760
        %741 = vmatpush1.msra.mxu0 %v740
        %742 = vmatprep.subr.mxu0 0.0
        %v743 = vand.u32 %v244, 4294901760
        %v744 = vsub.f32 %v244, %v743
        %v745 = vand.u32 %v744, 4294901760
        %746 = vmatpush1.msra.mxu0 %v745
        %747 = vmatprep.subr.mxu0 0.0
        %v748 = vand.u32 %v245, 4294901760
        %v749 = vsub.f32 %v245, %v748
        %v750 = vand.u32 %v749, 4294901760
        %751 = vmatpush1.msra.mxu0 %v750
        %752 = vmatprep.subr.mxu0 0.0
        %v753 = vand.u32 %v246, 4294901760
        %v754 = vsub.f32 %v246, %v753
        %v755 = vand.u32 %v754, 4294901760
        %756 = vmatpush1.msra.mxu0 %v755
        %757 = vmatprep.subr.mxu0 0.0
        %v758 = vand.u32 %v247, 4294901760
        %v759 = vsub.f32 %v247, %v758
        %v760 = vand.u32 %v759, 4294901760
        %761 = vmatpush1.msra.mxu0 %v760
        %762 = vmatprep.subr.mxu0 0.0
        %v763 = vand.u32 %v248, 4294901760
        %v764 = vsub.f32 %v248, %v763
        %v765 = vand.u32 %v764, 4294901760
        %766 = vmatpush1.msra.mxu0 %v765
        %767 = vmatprep.subr.mxu0 0.0
        %v768 = vand.u32 %v249, 4294901760
        %v769 = vsub.f32 %v249, %v768
        %v770 = vand.u32 %v769, 4294901760
        %771 = vmatpush1.msra.mxu0 %v770
        %772 = vmatprep.subr.mxu0 0.0
        %v773 = vand.u32 %v250, 4294901760
        %v774 = vsub.f32 %v250, %v773
        %v775 = vand.u32 %v774, 4294901760
        %776 = vmatpush1.msra.mxu0 %v775
        %777 = vmatprep.subr.mxu0 0.0
        %v778 = vand.u32 %v251, 4294901760
        %v779 = vsub.f32 %v251, %v778
        %v780 = vand.u32 %v779, 4294901760
        %781 = vmatpush1.msra.mxu0 %v780
        %782 = vmatprep.subr.mxu0 0.0
        %v783 = vand.u32 %v252, 4294901760
        %v784 = vsub.f32 %v252, %v783
        %v785 = vand.u32 %v784, 4294901760
        %786 = vmatpush1.msra.mxu0 %v785
        %787 = vmatprep.subr.mxu0 0.0
        %v788 = vand.u32 %v253, 4294901760
        %v789 = vsub.f32 %v253, %v788
        %v790 = vand.u32 %v789, 4294901760
        %791 = vmatpush1.msra.mxu0 %v790
        %792 = vmatprep.subr.mxu0 0.0
        %v793 = vand.u32 %v254, 4294901760
        %v794 = vsub.f32 %v254, %v793
        %v795 = vand.u32 %v794, 4294901760
        %796 = vmatpush1.msra.mxu0 %v795
        %797 = vmatprep.subr.mxu0 0.0
        %v798 = vand.u32 %v255, 4294901760
        %v799 = vsub.f32 %v255, %v798
        %v800 = vand.u32 %v799, 4294901760
        %801 = vmatpush1.msra.mxu0 %v800
        %802 = vmatprep.subr.mxu0 0.0
        %803 = vmatpush1.msra.mxu0 0.0
        %804 = vmatprep.subr.mxu0 0.0
        %805 = vmatpush1.msra.mxu0 0.0
        %806 = vmatprep.subr.mxu0 0.0
        %807 = vmatpush1.msra.mxu0 0.0
        %808 = vmatprep.subr.mxu0 0.0
        %809 = vmatpush1.msra.mxu0 0.0
        %810 = vmatprep.subr.mxu0 0.0
        %811 = vmatpush1.msra.mxu0 0.0
        %812 = vmatprep.subr.mxu0 0.0
        %813 = vmatpush1.msra.mxu0 0.0
        %814 = vmatprep.subr.mxu0 0.0
        %815 = vmatpush1.msra.mxu0 0.0
        %816 = vmatprep.subr.mxu0 0.0
        %817 = vmatpush1.msra.mxu0 0.0
        %818 = vmatprep.subr.mxu0 0.0
        %819 = vmatpush1.msra.mxu0 0.0
        %820 = vmatprep.subr.mxu0 0.0
        %821 = vmatpush1.msra.mxu0 0.0
        %822 = vmatprep.subr.mxu0 0.0
        %823 = vmatpush1.msra.mxu0 0.0
        %824 = vmatprep.subr.mxu0 0.0
        %825 = vmatpush1.msra.mxu0 0.0
        %826 = vmatprep.subr.mxu0 0.0
        %827 = vmatpush1.msra.mxu0 0.0
        %828 = vmatprep.subr.mxu0 0.0
        %829 = vmatpush1.msra.mxu0 0.0
        %830 = vmatprep.subr.mxu0 0.0
        %831 = vmatpush1.msra.mxu0 0.0
        %832 = vmatprep.subr.mxu0 0.0
        %833 = vmatpush1.msra.mxu0 0.0
        %834 = vmatprep.mubr.f32.mxu0 0.0
        %v835 = vand.u32 %v238, 4294901760
        %836 = vmatmul.mubr.f32.gmra.mrb[0].mxu0 %v835
        %v837 = vpop.f32.mrb[0].mxu0
        %v838 = vadd.f32 %v711, %v837
        %v839 = vpop.f32.mrb[0].mxu0
        %840 = vmatprep.mubr.f32.mxu0 0.0
        %v841 = vand.u32 %v239, 4294901760
        %842 = vmatmul.mubr.f32.gmra.mrb[0].mxu0 %v841
        %v843 = vpop.f32.mrb[0].mxu0
        %v844 = vadd.f32 %v719, %v843
        %v845 = vpop.f32.mrb[0].mxu0
        %846 = vdwg.mxu0
        %847 = vmatprep.subr.mxu0 0.0
        %v848 = vand.u32 %v240, 4294901760
        %849 = vmatpush1.msra.mxu0 %v848
        %850 = vmatprep.subr.mxu0 0.0
        %v851 = vand.u32 %v241, 4294901760
        %852 = vmatpush1.msra.mxu0 %v851
        %853 = vmatprep.subr.mxu0 0.0
        %v854 = vand.u32 %v242, 4294901760
        %855 = vmatpush1.msra.mxu0 %v854
        %856 = vmatprep.subr.mxu0 0.0
        %v857 = vand.u32 %v243, 4294901760
        %858 = vmatpush1.msra.mxu0 %v857
        %859 = vmatprep.subr.mxu0 0.0
        %v860 = vand.u32 %v244, 4294901760
        %861 = vmatpush1.msra.mxu0 %v860
        %862 = vmatprep.subr.mxu0 0.0
        %v863 = vand.u32 %v245, 4294901760
        %864 = vmatpush1.msra.mxu0 %v863
        %865 = vmatprep.subr.mxu0 0.0
        %v866 = vand.u32 %v246, 4294901760
        %867 = vmatpush1.msra.mxu0 %v866
        %868 = vmatprep.subr.mxu0 0.0
        %v869 = vand.u32 %v247, 4294901760
        %870 = vmatpush1.msra.mxu0 %v869
        %871 = vmatprep.subr.mxu0 0.0
        %v872 = vand.u32 %v248, 4294901760
        %873 = vmatpush1.msra.mxu0 %v872
        %874 = vmatprep.subr.mxu0 0.0
        %v875 = vand.u32 %v249, 4294901760
        %876 = vmatpush1.msra.mxu0 %v875
        %877 = vmatprep.subr.mxu0 0.0
        %v878 = vand.u32 %v250, 4294901760
        %879 = vmatpush1.msra.mxu0 %v878
        %880 = vmatprep.subr.mxu0 0.0
        %v881 = vand.u32 %v251, 4294901760
        %882 = vmatpush1.msra.mxu0 %v881
        %883 = vmatprep.subr.mxu0 0.0
        %v884 = vand.u32 %v252, 4294901760
        %885 = vmatpush1.msra.mxu0 %v884
        %886 = vmatprep.subr.mxu0 0.0
        %v887 = vand.u32 %v253, 4294901760
        %888 = vmatpush1.msra.mxu0 %v887
        %889 = vmatprep.subr.mxu0 0.0
        %v890 = vand.u32 %v254, 4294901760
        %891 = vmatpush1.msra.mxu0 %v890
        %892 = vmatprep.subr.mxu0 0.0
        %v893 = vand.u32 %v255, 4294901760
        %894 = vmatpush1.msra.mxu0 %v893
        %895 = vmatprep.subr.mxu0 0.0
        %896 = vmatpush1.msra.mxu0 0.0
        %897 = vmatprep.subr.mxu0 0.0
        %898 = vmatpush1.msra.mxu0 0.0
        %899 = vmatprep.subr.mxu0 0.0
        %900 = vmatpush1.msra.mxu0 0.0
        %901 = vmatprep.subr.mxu0 0.0
        %902 = vmatpush1.msra.mxu0 0.0
        %903 = vmatprep.subr.mxu0 0.0
        %904 = vmatpush1.msra.mxu0 0.0
        %905 = vmatprep.subr.mxu0 0.0
        %906 = vmatpush1.msra.mxu0 0.0
        %907 = vmatprep.subr.mxu0 0.0
        %908 = vmatpush1.msra.mxu0 0.0
        %909 = vmatprep.subr.mxu0 0.0
        %910 = vmatpush1.msra.mxu0 0.0
        %911 = vmatprep.subr.mxu0 0.0
        %912 = vmatpush1.msra.mxu0 0.0
        %913 = vmatprep.subr.mxu0 0.0
        %914 = vmatpush1.msra.mxu0 0.0
        %915 = vmatprep.subr.mxu0 0.0
        %916 = vmatpush1.msra.mxu0 0.0
        %917 = vmatprep.subr.mxu0 0.0
        %918 = vmatpush1.msra.mxu0 0.0
        %919 = vmatprep.subr.mxu0 0.0
        %920 = vmatpush1.msra.mxu0 0.0
        %921 = vmatprep.subr.mxu0 0.0
        %922 = vmatpush1.msra.mxu0 0.0
        %923 = vmatprep.subr.mxu0 0.0
        %924 = vmatpush1.msra.mxu0 0.0
        %925 = vmatprep.subr.mxu0 0.0
        %926 = vmatpush1.msra.mxu0 0.0
        %927 = vmatprep.mubr.f32.mxu0 0.0
        %v928 = vand.u32 %v238, 4294901760
        %929 = vmatmul.mubr.f32.gmra.mrb[0].mxu0 %v928
        %v930 = vpop.f32.mrb[0].mxu0
        %v931 = vadd.f32 %v838, %v930
        %v932 = vpop.f32.mrb[0].mxu0
        %933 = vmatprep.mubr.f32.mxu0 0.0
        %v934 = vand.u32 %v239, 4294901760
        %935 = vmatmul.mubr.f32.gmra.mrb[0].mxu0 %v934
        %v936 = vpop.f32.mrb[0].mxu0
        %v937 = vadd.f32 %v844, %v936
        %v938 = vpop.f32.mrb[0].mxu0
        %939 = vdwg.mxu0
        %940 = vadd.xlane.f32.xlu0 %v931
        %v941 = vpop.xlane.xlu0 %940
        %942 = vadd.xlane.f32.xlu0 %v937
        %v943 = vpop.xlane.xlu0 %942
        %v944 = vrcp.pop 128.0
        %v945 = vmul.f32 %v941, %v944
        %v946 = vmul.f32 %v943, %v944
        %v947 = vsub.f32 %v931, %v945
        %v948 = vsub.f32 %v937, %v946
        %v949 = vmul.f32 %v947, %v947
        %v950 = vmul.f32 %v948, %v948
        %951 = vadd.xlane.f32.xlu0 %v949
        %v952 = vpop.xlane.xlu0 %951
        %953 = vadd.xlane.f32.xlu0 %v950
        %v954 = vpop.xlane.xlu0 %953
        %v955 = vmul.f32 %v952, %v944
        %v956 = vmul.f32 %v954, %v944
        %v957 = vadd.f32 %v955, 1e-05
        %v958 = vadd.f32 %v956, 1e-05
        %v959 = vrsqrt.pop %v957
        %v960 = vrsqrt.pop %v958
        %v961 = vmul.f32 %v947, %v959
        %v962 = vmul.f32 %v948, %v960
        %v963 = vld [vmem:[%s2] sm:$0x1]
        %v965 = vlaneseq
        %v966 = vshrl.u32 %v965, 7
        %v967 = vsub.s32 0, %v966
        %v968 = vrot.slane %v963, %v967
        %v970 = vmul.f32 %v961, %v968
        %v971 = vmul.f32 %v962, %v968
        %v972 = vld [vmem:[%s3] sm:$0x1]
        %v974 = vlaneseq
        %v975 = vshrl.u32 %v974, 7
        %v976 = vsub.s32 0, %v975
        %v977 = vrot.slane %v972, %v976
        %v979 = vadd.f32 %v970, %v977
        %v980 = vadd.f32 %v971, %v977
        %981 = vst [vmem:[%s206] sm:$0xff] %v979
        %982 = vst [vmem:[%s206 + $0x8] sm:$0xff] %v980
        %s983 = sand.u32 %s116, 1
        %s984 = scalar_lea.sflag [#allocation4], %s983
        %s985 = sand.u32 %s116, 1
        %s986 = smul.addr %s985, 16
        %s987 = scalar_lea.vmem [#allocation5], %s986
        // Predicated region
        $region41: #{tpu_custom_call.1} parent=35 // pred_check
          %p988 = pneg %p126
        $region42: #{tpu_custom_call.1} parent=35 // pred_check_branch
          %990 = sbr.rel (%p988) target = $region44
        $region43: #{tpu_custom_call.1} parent=35 // pred_region
          %s991 = smul.u32 2, %s19
          %s993 = ssub.s32 256, 256
          %994 = vsyncadd %s984, %s993
          %s995 = smul.addr %s991, 128
          %s996 = scalar_lea.hbm %s4, %s995
          %s997 = sshll.u32 %s987, 4
          %s998 = int_to_ptr.vmem [resolvable:$true] %s997
          %1003 = dma.vmem_to_hbm [thread:$0]  %s998, 256, %s996, %s984, 128, 128, 8
        $region44: #{tpu_custom_call.1} parent=35 // pred_fallthru
          _
      $region36: #{tpu_custom_call.1} parent=5 // pred_fallthru
        _
      %p1004 = scmp.le.s32.totalorder 2, %s14
      // Predicated region
      $region45: #{tpu_custom_call.1} parent=5 // pred_check
        %p1005 = pneg %p1004
      $region46: #{tpu_custom_call.1} parent=5 // pred_check_branch
        %1007 = sbr.rel (%p1005) target = $region48
      $region47: #{tpu_custom_call.1} parent=5 // pred_region
        %s1008 = ssub.s32 %s14, 2
        // Predicated region
        $region49: #{tpu_custom_call.1} parent=47 // pred_check
          %p1009 = pneg %p132
        $region50: #{tpu_custom_call.1} parent=47 // pred_check_branch
          %1011 = sbr.rel (%p1009) target = $region52
        $region51: #{tpu_custom_call.1} parent=47 // pred_region
          %s1012 = sand.u32 %s117, 1
          %s1013 = scalar_lea.sflag [#allocation4], %s1012
          %s1014 = sand.u32 %s117, 1
          %s1015 = smul.addr %s1014, 16
          %s1016 = scalar_lea.vmem [#allocation5], %s1015
          %1017 = dma.done %s1013, 256
        $region52: #{tpu_custom_call.1} parent=47 // pred_fallthru
          _
      $region48: #{tpu_custom_call.1} parent=5 // pred_fallthru
        _
    $region6: #{tpu_custom_call.1} parent=1 // loop_footer
      %s18 = sadd.s32 1, %s14
    $region7: #{tpu_custom_call.1} parent=1 // loop_footer_branch
      %13 = sbr.rel target = $region3
    $region8: #{tpu_custom_call.1} parent=1 // loop_exit
      _
    %1018 = vsyncpa [#allocation3], 1
    %s1019 = scalar_lea.sflag [#allocation3], 1
    %1020 = vsyncpa %s1019, 1
    %1021 = vsyncpa [#allocation4], 1
    %s1022 = scalar_lea.sflag [#allocation4], 1
    %1023 = vsyncpa %s1022, 1

</llo_original>
